<compile_context>
chip_gen: v7x
topology: tpu7x:2x2x1
jax: 0.10.0
libtpu: 0.0.40
codegen_flags: <defaults>
</compile_context>

<pallas_src>
import jax
import jax.numpy as jnp
from jax.experimental import pallas as pl
from jax.experimental.pallas import tpu as pltpu


def _round_up(v, m):
    return (v + m - 1) // m * m


def _erf(x):
    # Abramowitz & Stegun 7.1.26, |err| <= 1.5e-7. Uses only exp / mul / add /
    # where, all of which lower cleanly in Mosaic (exp -> EUP slot).
    a1, a2, a3, a4, a5 = (0.254829592, -0.284496736, 1.421413741,
                          -1.453152027, 1.061405429)
    p = 0.3275911
    z = jnp.abs(x)
    t = 1.0 / (1.0 + p * z)
    poly = ((((a5 * t + a4) * t + a3) * t + a2) * t + a1) * t
    y = 1.0 - poly * jnp.exp(-z * z)
    return jnp.where(x < 0.0, -y, y)


def _gelu_exact(x):
    # Matches nn.GELU() (approximate='none'): 0.5 * x * (1 + erf(x / sqrt(2))).
    return 0.5 * x * (1.0 + _erf(x * 0.7071067811865476))


def _ffn_kernel(x_ref, w1_ref, b1_ref, w2_ref, b2_ref, o_ref):
    # x_ref : (block_m, D_pad)   activation tile (lane-dense, 128-multiple)
    # w1_ref: (D_pad, H_pad)     first linear weight (pre-transposed, padded)
    # b1_ref: (1, H_pad)
    # w2_ref: (H_pad, D_pad)     second linear weight (pre-transposed, padded)
    # b2_ref: (1, D_pad)
    # o_ref : (block_m, D_pad)   lane-dense output tile
    x = x_ref[...]
    h = jnp.dot(x, w1_ref[...], preferred_element_type=jnp.float32)
    h = _gelu_exact(h + b1_ref[...])
    y = jnp.dot(h, w2_ref[...], preferred_element_type=jnp.float32)
    o_ref[...] = (y + b2_ref[...]).astype(o_ref.dtype)


def _pad_to(a, shape):
    """Zero-pad a 2-D array to `shape` (no-op if already that shape)."""
    if a.shape == tuple(shape):
        return a
    pads = [(0, t - s) for s, t in zip(a.shape, shape)]
    return jnp.pad(a, pads)


def feedforward_forward(x, w1, b1, w2, b2):
    """PyTorch FeedForward forward pass.

    x : (..., dim)
    w1: (hidden_dim, dim), b1: (hidden_dim,)   # torch nn.Linear layout
    w2: (dim, hidden_dim), b2: (dim,)
    Dropout (p=0.0 default / eval mode) is the identity and therefore omitted.
    """
    orig_shape = x.shape
    dim = orig_shape[-1]
    hidden = w1.shape[0]

    x2d = x.reshape(-1, dim)
    M = x2d.shape[0]

    # Lane-dense padding of the channel dims (done once in the wrapper).
    d_pad = _round_up(dim, 128)
    h_pad = _round_up(hidden, 128)

    # Fuse batch*seq into the matmul M dimension and tile it. Pick the largest
    # M-tile that keeps x/out tiles + resident weights comfortably in VMEM.
    if M >= 512 and (d_pad + h_pad) <= 4096:
        block_m = 512
    elif M >= 256:
        block_m = 256
    elif M >= 128:
        block_m = 128
    else:
        block_m = _round_up(M, 8)
    m_pad = _round_up(M, block_m)

    f32 = jnp.float32
    xp = _pad_to(x2d.astype(f32), (m_pad, d_pad))
    w1p = _pad_to(w1.T.astype(f32), (d_pad, h_pad))
    b1p = _pad_to(b1.astype(f32).reshape(1, hidden), (1, h_pad))
    w2p = _pad_to(w2.T.astype(f32), (h_pad, d_pad))
    b2p = _pad_to(b2.astype(f32).reshape(1, dim), (1, d_pad))

    out = pl.pallas_call(
        _ffn_kernel,
        out_shape=jax.ShapeDtypeStruct((m_pad, d_pad), f32),
        grid_spec=pltpu.PrefetchScalarGridSpec(
            num_scalar_prefetch=0,
            grid=(m_pad // block_m,),
            in_specs=[
                pl.BlockSpec((block_m, d_pad), lambda i: (i, 0)),
                pl.BlockSpec((d_pad, h_pad), lambda i: (0, 0)),
                pl.BlockSpec((1, h_pad), lambda i: (0, 0)),
                pl.BlockSpec((h_pad, d_pad), lambda i: (0, 0)),
                pl.BlockSpec((1, d_pad), lambda i: (0, 0)),
            ],
            out_specs=pl.BlockSpec((block_m, d_pad), lambda i: (i, 0)),
        ),
        compiler_params=pltpu.CompilerParams(
            dimension_semantics=("parallel",)),
    )(xp, w1p, b1p, w2p, b2p)

    y = out[:M, :dim].astype(x.dtype)
    return y.reshape(orig_shape)


def _reference(x, w1, b1, w2, b2):
    h = jnp.einsum("...d,hd->...h", x, w1) + b1
    h = jax.nn.gelu(h, approximate=False)      # exact GELU, like nn.GELU()
    return jnp.einsum("...h,dh->...d", h, w2) + b2


if __name__ == "__main__":
    # Small shapes consistent with the module: dim=32, hidden_dim=64,
    # batch=2, seq=8.
    batch, seq, dim, hidden_dim = 2, 8, 32, 64

    key = jax.random.PRNGKey(0)
    kx, kw1, kb1, kw2, kb2 = jax.random.split(key, 5)
    x = jax.random.normal(kx, (batch, seq, dim), dtype=jnp.float32)
    w1 = 0.1 * jax.random.normal(kw1, (hidden_dim, dim), dtype=jnp.float32)
    b1 = 0.1 * jax.random.normal(kb1, (hidden_dim,), dtype=jnp.float32)
    w2 = 0.1 * jax.random.normal(kw2, (dim, hidden_dim), dtype=jnp.float32)
    b2 = 0.1 * jax.random.normal(kb2, (dim,), dtype=jnp.float32)

    out = feedforward_forward(x, w1, b1, w2, b2)
    out = jax.block_until_ready(out)

    ref = _reference(x, w1, b1, w2, b2)
    assert out.shape == (batch, seq, dim)
    assert jnp.allclose(out, ref, atol=1e-4, rtol=1e-4), "mismatch vs reference"

    print("KERNEL_OK")
</pallas_src>

<mosaic_0001>
module attributes {stable_mosaic.version = 11 : i64} {
  func.func @_ffn_kernel(%arg0: i32, %arg1: memref<16x128xf32, #tpu.memory_space<vmem>>, %arg2: memref<128x128xf32, #tpu.memory_space<vmem>>, %arg3: memref<1x128xf32, #tpu.memory_space<vmem>>, %arg4: memref<128x128xf32, #tpu.memory_space<vmem>>, %arg5: memref<1x128xf32, #tpu.memory_space<vmem>>, %arg6: memref<16x128xf32, #tpu.memory_space<vmem>>) attributes {dimension_semantics = [#tpu.dimension_semantics<parallel>], iteration_bounds = array<i64: 1>, scalar_prefetch = 0 : i64, scratch_operands = 0 : i64, tpu.core_type = #tpu.core_type<tc>, window_params = [{transform_indices = @transform_0, window_bounds = array<i64: 16, 128>}, {pipeline_mode = #tpu.pipeline_mode<synchronous>, transform_indices = @transform_1, window_bounds = array<i64: 128, 128>}, {pipeline_mode = #tpu.pipeline_mode<synchronous>, transform_indices = @transform_2, window_bounds = array<i64: 1, 128>}, {pipeline_mode = #tpu.pipeline_mode<synchronous>, transform_indices = @transform_3, window_bounds = array<i64: 128, 128>}, {pipeline_mode = #tpu.pipeline_mode<synchronous>, transform_indices = @transform_4, window_bounds = array<i64: 1, 128>}, {transform_indices = @transform_5, window_bounds = array<i64: 16, 128>}]} {
    %c0 = arith.constant 0 : index
    %c0_0 = arith.constant 0 : index
    %0 = vector.load %arg1[%c0, %c0_0] : memref<16x128xf32, #tpu.memory_space<vmem>>, vector<16x128xf32>
    %c0_1 = arith.constant 0 : index
    %c0_2 = arith.constant 0 : index
    %1 = vector.load %arg2[%c0_1, %c0_2] : memref<128x128xf32, #tpu.memory_space<vmem>>, vector<128x128xf32>
    %cst = arith.constant dense<0.000000e+00> : vector<16x128xf32>
    %2 = tpu.matmul %0, %1, %cst {dimension_numbers = #tpu.dot_dimension_numbers<[1], [0], [0], [1], [0, 0, 1, 1], [], []>} : vector<16x128xf32>, vector<128x128xf32>, vector<16x128xf32> -> vector<16x128xf32>
    %c0_3 = arith.constant 0 : index
    %c0_4 = arith.constant 0 : index
    %3 = vector.load %arg3[%c0_3, %c0_4] : memref<1x128xf32, #tpu.memory_space<vmem>>, vector<1x128xf32>
    %4 = vector.broadcast %3 : vector<1x128xf32> to vector<16x128xf32>
    %5 = arith.addf %2, %4 : vector<16x128xf32>
    %cst_5 = arith.constant 5.000000e-01 : f32
    %6 = vector.broadcast %cst_5 : f32 to vector<16x128xf32>
    %7 = arith.mulf %6, %5 : vector<16x128xf32>
    %cst_6 = arith.constant 0.707106769 : f32
    %8 = vector.broadcast %cst_6 : f32 to vector<16x128xf32>
    %9 = arith.mulf %5, %8 : vector<16x128xf32>
    %10 = math.absf %9 : vector<16x128xf32>
    %cst_7 = arith.constant 0.327591091 : f32
    %11 = vector.broadcast %cst_7 : f32 to vector<16x128xf32>
    %12 = arith.mulf %11, %10 : vector<16x128xf32>
    %cst_8 = arith.constant 1.000000e+00 : f32
    %13 = vector.broadcast %cst_8 : f32 to vector<16x128xf32>
    %14 = arith.addf %13, %12 : vector<16x128xf32>
    %cst_9 = arith.constant 1.000000e+00 : f32
    %15 = vector.broadcast %cst_9 : f32 to vector<16x128xf32>
    %16 = arith.divf %15, %14 : vector<16x128xf32>
    %cst_10 = arith.constant 1.06140542 : f32
    %17 = vector.broadcast %cst_10 : f32 to vector<16x128xf32>
    %18 = arith.mulf %17, %16 : vector<16x128xf32>
    %cst_11 = arith.constant -1.45315206 : f32
    %19 = vector.broadcast %cst_11 : f32 to vector<16x128xf32>
    %20 = arith.addf %18, %19 : vector<16x128xf32>
    %21 = arith.mulf %20, %16 : vector<16x128xf32>
    %cst_12 = arith.constant 1.42141378 : f32
    %22 = vector.broadcast %cst_12 : f32 to vector<16x128xf32>
    %23 = arith.addf %21, %22 : vector<16x128xf32>
    %24 = arith.mulf %23, %16 : vector<16x128xf32>
    %cst_13 = arith.constant -0.284496725 : f32
    %25 = vector.broadcast %cst_13 : f32 to vector<16x128xf32>
    %26 = arith.addf %24, %25 : vector<16x128xf32>
    %27 = arith.mulf %26, %16 : vector<16x128xf32>
    %cst_14 = arith.constant 0.254829586 : f32
    %28 = vector.broadcast %cst_14 : f32 to vector<16x128xf32>
    %29 = arith.addf %27, %28 : vector<16x128xf32>
    %30 = arith.mulf %29, %16 : vector<16x128xf32>
    %cst_15 = arith.constant 0.000000e+00 : f32
    %31 = vector.broadcast %cst_15 : f32 to vector<16x128xf32>
    %32 = arith.subf %31, %10 : vector<16x128xf32>
    %33 = arith.mulf %32, %10 : vector<16x128xf32>
    %34 = math.exp %33 : vector<16x128xf32>
    %35 = arith.mulf %30, %34 : vector<16x128xf32>
    %cst_16 = arith.constant 1.000000e+00 : f32
    %36 = vector.broadcast %cst_16 : f32 to vector<16x128xf32>
    %37 = arith.subf %36, %35 : vector<16x128xf32>
    %cst_17 = arith.constant 0.000000e+00 : f32
    %38 = vector.broadcast %cst_17 : f32 to vector<16x128xf32>
    %39 = arith.cmpf olt, %9, %38 : vector<16x128xf32>
    %cst_18 = arith.constant 0.000000e+00 : f32
    %40 = vector.broadcast %cst_18 : f32 to vector<16x128xf32>
    %41 = arith.subf %40, %37 : vector<16x128xf32>
    %42 = arith.select %39, %41, %37 : vector<16x128xi1>, vector<16x128xf32>
    %cst_19 = arith.constant 1.000000e+00 : f32
    %43 = vector.broadcast %cst_19 : f32 to vector<16x128xf32>
    %44 = arith.addf %43, %42 : vector<16x128xf32>
    %45 = arith.mulf %7, %44 : vector<16x128xf32>
    %c0_20 = arith.constant 0 : index
    %c0_21 = arith.constant 0 : index
    %46 = vector.load %arg4[%c0_20, %c0_21] : memref<128x128xf32, #tpu.memory_space<vmem>>, vector<128x128xf32>
    %cst_22 = arith.constant dense<0.000000e+00> : vector<16x128xf32>
    %47 = tpu.matmul %45, %46, %cst_22 {dimension_numbers = #tpu.dot_dimension_numbers<[1], [0], [0], [1], [0, 0, 1, 1], [], []>} : vector<16x128xf32>, vector<128x128xf32>, vector<16x128xf32> -> vector<16x128xf32>
    %c0_23 = arith.constant 0 : index
    %c0_24 = arith.constant 0 : index
    %48 = vector.load %arg5[%c0_23, %c0_24] : memref<1x128xf32, #tpu.memory_space<vmem>>, vector<1x128xf32>
    %49 = vector.broadcast %48 : vector<1x128xf32> to vector<16x128xf32>
    %50 = arith.addf %47, %49 : vector<16x128xf32>
    %c0_25 = arith.constant 0 : index
    %c0_26 = arith.constant 0 : index
    %51 = vector.load %arg6[%c0_25, %c0_26] : memref<16x128xf32, #tpu.memory_space<vmem>>, vector<16x128xf32>
    tpu.vector_store %arg6[%c0_25, %c0_26], %50 {strides = array<i32>} : memref<16x128xf32, #tpu.memory_space<vmem>>, vector<16x128xf32>,
    return
  }
  func.func @transform_0(%arg0: i32) -> (i32, i32) {
    %c0_i32 = arith.constant 0 : i32
    %c0_i32_0 = arith.constant 0 : i32
    return %arg0, %c0_i32 : i32, i32
  }
  func.func @transform_1(%arg0: i32) -> (i32, i32) {
    %c0_i32 = arith.constant 0 : i32
    %c0_i32_0 = arith.constant 0 : i32
    %c0_i32_1 = arith.constant 0 : i32
    return %c0_i32, %c0_i32_0 : i32, i32
  }
  func.func @transform_2(%arg0: i32) -> (i32, i32) {
    %c0_i32 = arith.constant 0 : i32
    %c0_i32_0 = arith.constant 0 : i32
    %c0_i32_1 = arith.constant 0 : i32
    return %c0_i32, %c0_i32_0 : i32, i32
  }
  func.func @transform_3(%arg0: i32) -> (i32, i32) {
    %c0_i32 = arith.constant 0 : i32
    %c0_i32_0 = arith.constant 0 : i32
    %c0_i32_1 = arith.constant 0 : i32
    return %c0_i32, %c0_i32_0 : i32, i32
  }
  func.func @transform_4(%arg0: i32) -> (i32, i32) {
    %c0_i32 = arith.constant 0 : i32
    %c0_i32_0 = arith.constant 0 : i32
    %c0_i32_1 = arith.constant 0 : i32
    return %c0_i32, %c0_i32_0 : i32, i32
  }
  func.func @transform_5(%arg0: i32) -> (i32, i32) {
    %c0_i32 = arith.constant 0 : i32
    %c0_i32_0 = arith.constant 0 : i32
    return %arg0, %c0_i32 : i32, i32
  }
}

</mosaic_0001>

<llo_original>
// kernel: tpu_custom_call.1
$region0: #{tpu_custom_call.1}
  #allocation0 [shape = 'u32[]', space=smem, size = 0x4, offset = 0x4, fixed_abs, tag = 'smem constant byte address 0x4 - core index']
  #allocation1 [shape = 'u32[144,128]{1,0:T(1,128)}', space=vmem, size = 0x12000, scoped, tag = 'internal scratch']
  %s0 = inlined_call_operand.hbm [shape: f32[16,128], index: 0, kind: input, shape index: {}]
  %s1 = inlined_call_operand.hbm [shape: f32[128,128], index: 1, kind: input, shape index: {}]
  %s2 = inlined_call_operand.vmem [shape: f32[1,128], index: 2, kind: input, shape index: {}]
  %s3 = inlined_call_operand.hbm [shape: f32[128,128], index: 3, kind: input, shape index: {}]
  %s4 = inlined_call_operand.vmem [shape: f32[1,128], index: 4, kind: input, shape index: {}]
  %s5 = inlined_call_operand.hbm [shape: f32[16,128], index: 5, kind: output, shape index: {}]
  %s6 = sld [smem:[#allocation0]]
  $region42: #{tpu_custom_call.1} parent=0
    _
  %s8 = ssub.s32 1, %s6
  %s9 = scalar_select 0, %s8, %s6
  $region1: #{tpu_custom_call.1} parent=0
    #allocation2 [shape = 'u8[8192]{0}', space=vmem, size = 0x2000, scoped, tag = 'input window, operand 0, single buffered']
    #allocation3 [shape = 's32[1]{0}', space=sflag, size = 0x4, scoped, tag = 'scoped memory for tpu_custom_call.1']
    #allocation4 [shape = 's32[1]{0}', space=sflag, size = 0x4, scoped, tag = 'scoped memory for tpu_custom_call.1']
    #allocation5 [shape = 'u8[65536]{0}', space=vmem, size = 0x10000, scoped, tag = 'input window, operand 1, single buffered']
    #allocation6 [shape = 's32[1]{0}', space=sflag, size = 0x4, scoped, tag = 'scoped memory for tpu_custom_call.1']
    #allocation7 [shape = 'u8[65536]{0}', space=vmem, size = 0x10000, scoped, tag = 'input window, operand 3, single buffered']
    #allocation8 [shape = 'u8[8192]{0}', space=vmem, size = 0x2000, scoped, tag = 'output window, operand 0, single buffered']
    %10 = vsyncpa [#allocation3], 0
    %11 = vsyncpa [#allocation6], 0
    %12 = vsyncpa [#allocation4], 0
    // Predicated region
    $region2: #{tpu_custom_call.1} parent=1 // pred_check
      _
    $region3: #{tpu_custom_call.1} parent=1 // pred_check_branch
      %14 = sbr.rel (0) target = $region5
    $region4: #{tpu_custom_call.1} parent=1 // pred_region
      %s16 = ssub.s32 256, 256
      %17 = vsyncadd [#allocation3], %s16
      %s18 = sshll.u32 [#allocation2], 4
      %s19 = int_to_ptr.vmem [resolvable:$true] %s18
      %24 = dma.hbm_to_vmem [thread:$0]  %s0, 256, %s19, [#allocation3], 128, 128, 8
    $region5: #{tpu_custom_call.1} parent=1 // pred_fallthru
      _
    // Predicated region
    $region6: #{tpu_custom_call.1} parent=1 // pred_check
      _
    $region7: #{tpu_custom_call.1} parent=1 // pred_check_branch
      %26 = sbr.rel (0) target = $region9
    $region8: #{tpu_custom_call.1} parent=1 // pred_region
      %s28 = ssub.s32 2048, 2048
      %29 = vsyncadd [#allocation6], %s28
      %s30 = sshll.u32 [#allocation5], 4
      %s31 = int_to_ptr.vmem [resolvable:$true] %s30
      %36 = dma.hbm_to_vmem [thread:$0]  %s1, 2048, %s31, [#allocation6], 128, 128, 8
    $region9: #{tpu_custom_call.1} parent=1 // pred_fallthru
      _
    // Predicated region
    $region10: #{tpu_custom_call.1} parent=1 // pred_check
      _
    $region11: #{tpu_custom_call.1} parent=1 // pred_check_branch
      %38 = sbr.rel (0) target = $region13
    $region12: #{tpu_custom_call.1} parent=1 // pred_region
      _
    $region13: #{tpu_custom_call.1} parent=1 // pred_fallthru
      _
    // Predicated region
    $region14: #{tpu_custom_call.1} parent=1 // pred_check
      _
    $region15: #{tpu_custom_call.1} parent=1 // pred_check_branch
      %40 = sbr.rel (0) target = $region17
    $region16: #{tpu_custom_call.1} parent=1 // pred_region
      %s42 = ssub.s32 2048, 2048
      %43 = vsyncadd [#allocation6], %s42
      %s44 = sshll.u32 [#allocation7], 4
      %s45 = int_to_ptr.vmem [resolvable:$true] %s44
      %50 = dma.hbm_to_vmem [thread:$0]  %s3, 2048, %s45, [#allocation6], 128, 128, 8
    $region17: #{tpu_custom_call.1} parent=1 // pred_fallthru
      _
    // Predicated region
    $region18: #{tpu_custom_call.1} parent=1 // pred_check
      _
    $region19: #{tpu_custom_call.1} parent=1 // pred_check_branch
      %52 = sbr.rel (0) target = $region21
    $region20: #{tpu_custom_call.1} parent=1 // pred_region
      _
    $region21: #{tpu_custom_call.1} parent=1 // pred_fallthru
      _
    // Predicated region
    $region22: #{tpu_custom_call.1} parent=1 // pred_check
      _
    $region23: #{tpu_custom_call.1} parent=1 // pred_check_branch
      %54 = sbr.rel (0) target = $region25
    $region24: #{tpu_custom_call.1} parent=1 // pred_region
      %55 = dma.done [#allocation3], 256
    $region25: #{tpu_custom_call.1} parent=1 // pred_fallthru
      _
    // Predicated region
    $region26: #{tpu_custom_call.1} parent=1 // pred_check
      _
    $region27: #{tpu_custom_call.1} parent=1 // pred_check_branch
      %57 = sbr.rel (0) target = $region29
    $region28: #{tpu_custom_call.1} parent=1 // pred_region
      %58 = dma.done [#allocation6], 2048
    $region29: #{tpu_custom_call.1} parent=1 // pred_fallthru
      _
    // Predicated region
    $region30: #{tpu_custom_call.1} parent=1 // pred_check
      _
    $region31: #{tpu_custom_call.1} parent=1 // pred_check_branch
      %60 = sbr.rel (0) target = $region33
    $region32: #{tpu_custom_call.1} parent=1 // pred_region
      %61 = dma.done [#allocation6], 2048
    $region33: #{tpu_custom_call.1} parent=1 // pred_fallthru
      _
    %v62 = vld [vmem:[#allocation2] sm:$0xff]
    %v63 = vld [vmem:[#allocation2 + $0x8] sm:$0xff]
    %v64 = vld [vmem:[#allocation5] sm:$0xff]
    %v65 = vld [vmem:[#allocation5 + $0x8] sm:$0xff]
    %v66 = vld [vmem:[#allocation5 + $0x10] sm:$0xff]
    %v67 = vld [vmem:[#allocation5 + $0x18] sm:$0xff]
    %v68 = vld [vmem:[#allocation5 + $0x20] sm:$0xff]
    %v69 = vld [vmem:[#allocation5 + $0x28] sm:$0xff]
    %v70 = vld [vmem:[#allocation5 + $0x30] sm:$0xff]
    %v71 = vld [vmem:[#allocation5 + $0x38] sm:$0xff]
    %v72 = vld [vmem:[#allocation5 + $0x40] sm:$0xff]
    %v73 = vld [vmem:[#allocation5 + $0x48] sm:$0xff]
    %v74 = vld [vmem:[#allocation5 + $0x50] sm:$0xff]
    %v75 = vld [vmem:[#allocation5 + $0x58] sm:$0xff]
    %v76 = vld [vmem:[#allocation5 + $0x60] sm:$0xff]
    %v77 = vld [vmem:[#allocation5 + $0x68] sm:$0xff]
    %v78 = vld [vmem:[#allocation5 + $0x70] sm:$0xff]
    %v79 = vld [vmem:[#allocation5 + $0x78] sm:$0xff]
    %v80 = vld [vmem:[%s2] sm:$0x1]
    %v82 = vlaneseq
    %v83 = vshrl.u32 %v82, 7
    %v84 = vsub.s32 0, %v83
    %v85 = vrot.slane %v80, %v84
    %87 = vmatprep.subr.mxu0 0.0
    %88 = vmatpush1.msra.mxu0 %v64
    %89 = vmatprep.subr.mxu0 0.0
    %90 = vmatpush1.msra.mxu0 %v65
    %91 = vmatprep.subr.mxu0 0.0
    %92 = vmatpush1.msra.mxu0 %v66
    %93 = vmatprep.subr.mxu0 0.0
    %94 = vmatpush1.msra.mxu0 %v67
    %95 = vmatprep.subr.mxu0 0.0
    %96 = vmatpush1.msra.mxu0 %v68
    %97 = vmatprep.subr.mxu0 0.0
    %98 = vmatpush1.msra.mxu0 %v69
    %99 = vmatprep.subr.mxu0 0.0
    %100 = vmatpush1.msra.mxu0 %v70
    %101 = vmatprep.subr.mxu0 0.0
    %102 = vmatpush1.msra.mxu0 %v71
    %103 = vmatprep.subr.mxu0 0.0
    %104 = vmatpush1.msra.mxu0 %v72
    %105 = vmatprep.subr.mxu0 0.0
    %106 = vmatpush1.msra.mxu0 %v73
    %107 = vmatprep.subr.mxu0 0.0
    %108 = vmatpush1.msra.mxu0 %v74
    %109 = vmatprep.subr.mxu0 0.0
    %110 = vmatpush1.msra.mxu0 %v75
    %111 = vmatprep.subr.mxu0 0.0
    %112 = vmatpush1.msra.mxu0 %v76
    %113 = vmatprep.subr.mxu0 0.0
    %114 = vmatpush1.msra.mxu0 %v77
    %115 = vmatprep.subr.mxu0 0.0
    %116 = vmatpush1.msra.mxu0 %v78
    %117 = vmatprep.subr.mxu0 0.0
    %118 = vmatpush1.msra.mxu0 %v79
    %119 = vmatprep.subr.mxu0 0.0
    %120 = vmatpush1.msra.mxu0 0.0
    %121 = vmatprep.subr.mxu0 0.0
    %122 = vmatpush1.msra.mxu0 0.0
    %123 = vmatprep.subr.mxu0 0.0
    %124 = vmatpush1.msra.mxu0 0.0
    %125 = vmatprep.subr.mxu0 0.0
    %126 = vmatpush1.msra.mxu0 0.0
    %127 = vmatprep.subr.mxu0 0.0
    %128 = vmatpush1.msra.mxu0 0.0
    %129 = vmatprep.subr.mxu0 0.0
    %130 = vmatpush1.msra.mxu0 0.0
    %131 = vmatprep.subr.mxu0 0.0
    %132 = vmatpush1.msra.mxu0 0.0
    %133 = vmatprep.subr.mxu0 0.0
    %134 = vmatpush1.msra.mxu0 0.0
    %135 = vmatprep.subr.mxu0 0.0
    %136 = vmatpush1.msra.mxu0 0.0
    %137 = vmatprep.subr.mxu0 0.0
    %138 = vmatpush1.msra.mxu0 0.0
    %139 = vmatprep.subr.mxu0 0.0
    %140 = vmatpush1.msra.mxu0 0.0
    %141 = vmatprep.subr.mxu0 0.0
    %142 = vmatpush1.msra.mxu0 0.0
    %143 = vmatprep.subr.mxu0 0.0
    %144 = vmatpush1.msra.mxu0 0.0
    %145 = vmatprep.subr.mxu0 0.0
    %146 = vmatpush1.msra.mxu0 0.0
    %147 = vmatprep.subr.mxu0 0.0
    %148 = vmatpush1.msra.mxu0 0.0
    %149 = vmatprep.subr.mxu0 0.0
    %150 = vmatpush1.msra.mxu0 0.0
    %151 = vmatprep.mubr.f32.mxu0 0.0
    %152 = vmatmul.mubr.f32.gmra.mrb[0].mxu0 %v62
    %v153 = vpop.f32.mrb[0].mxu0
    %v154 = vadd.f32 %v85, %v153
    %v155 = vpop.f32.mrb[0].mxu0
    %156 = vmatprep.mubr.f32.mxu0 0.0
    %157 = vmatmul.mubr.f32.gmra.mrb[0].mxu0 %v63
    %v158 = vpop.f32.mrb[0].mxu0
    %v159 = vadd.f32 %v85, %v158
    %v160 = vpop.f32.mrb[0].mxu0
    %161 = vdwg.mxu0
    %v162 = vmul.f32 %v154, 0.5
    %v163 = vmul.f32 %v159, 0.5
    %v164 = vmul.f32 %v154, 0.70710677
    %v165 = vmul.f32 %v159, 0.70710677
    %v166 = vand.u32 2147483647, %v164
    %v167 = vand.u32 2147483647, %v165
    %v168 = vmul.f32 %v166, 0.3275911
    %v169 = vmul.f32 %v167, 0.3275911
    %v170 = vadd.f32 %v168, 1.0
    %v171 = vadd.f32 %v169, 1.0
    %v172 = vrcp.pop %v170
    %v173 = vmul.f32 1.0, %v172
    %v174 = vrcp.pop %v171
    %v175 = vmul.f32 1.0, %v174
    %v176 = vmul.f32 %v173, 1.0614054
    %v177 = vmul.f32 %v175, 1.0614054
    %v178 = vadd.f32 %v176, -1.4531521
    %v179 = vadd.f32 %v177, -1.4531521
    %v180 = vmul.f32 %v178, %v173
    %v181 = vmul.f32 %v179, %v175
    %v182 = vadd.f32 %v180, 1.4214138
    %v183 = vadd.f32 %v181, 1.4214138
    %v184 = vmul.f32 %v182, %v173
    %v185 = vmul.f32 %v183, %v175
    %v186 = vadd.f32 %v184, -0.28449672
    %v187 = vadd.f32 %v185, -0.28449672
    %v188 = vmul.f32 %v186, %v173
    %v189 = vmul.f32 %v187, %v175
    %v190 = vadd.f32 %v188, 0.2548296
    %v191 = vadd.f32 %v189, 0.2548296
    %v192 = vmul.f32 %v190, %v173
    %v193 = vmul.f32 %v191, %v175
    %v194 = vsub.f32 0.0, %v166
    %v195 = vsub.f32 0.0, %v167
    %v196 = vmul.f32 %v194, %v166
    %v197 = vmul.f32 %v195, %v167
    %v198 = vmul.f32 %v196, 1.442695
    %v199 = vpow.pop %v198
    %v200 = vmul.f32 %v197, 1.442695
    %v201 = vpow.pop %v200
    %v202 = vmul.f32 %v192, %v199
    %v203 = vmul.f32 %v193, %v201
    %v204 = vsub.f32 1.0, %v202
    %v205 = vsub.f32 1.0, %v203
    %vm206 = vcmp.lt.f32.partialorder %v164, 0.0
    %vm207 = vcmp.lt.f32.partialorder %v165, 0.0
    %v208 = vsub.f32 0.0, %v204
    %v209 = vsub.f32 0.0, %v205
    %v210 = vsel %vm206, %v208, %v204
    %v211 = vsel %vm207, %v209, %v205
    %v212 = vadd.f32 %v210, 1.0
    %v213 = vadd.f32 %v211, 1.0
    %v214 = vmul.f32 %v162, %v212
    %v215 = vmul.f32 %v163, %v213
    %v216 = vld [vmem:[#allocation7] sm:$0xff]
    %v217 = vld [vmem:[#allocation7 + $0x8] sm:$0xff]
    %v218 = vld [vmem:[#allocation7 + $0x10] sm:$0xff]
    %v219 = vld [vmem:[#allocation7 + $0x18] sm:$0xff]
    %v220 = vld [vmem:[#allocation7 + $0x20] sm:$0xff]
    %v221 = vld [vmem:[#allocation7 + $0x28] sm:$0xff]
    %v222 = vld [vmem:[#allocation7 + $0x30] sm:$0xff]
    %v223 = vld [vmem:[#allocation7 + $0x38] sm:$0xff]
    %v224 = vld [vmem:[#allocation7 + $0x40] sm:$0xff]
    %v225 = vld [vmem:[#allocation7 + $0x48] sm:$0xff]
    %v226 = vld [vmem:[#allocation7 + $0x50] sm:$0xff]
    %v227 = vld [vmem:[#allocation7 + $0x58] sm:$0xff]
    %v228 = vld [vmem:[#allocation7 + $0x60] sm:$0xff]
    %v229 = vld [vmem:[#allocation7 + $0x68] sm:$0xff]
    %v230 = vld [vmem:[#allocation7 + $0x70] sm:$0xff]
    %v231 = vld [vmem:[#allocation7 + $0x78] sm:$0xff]
    %v232 = vld [vmem:[%s4] sm:$0x1]
    %v234 = vlaneseq
    %v235 = vshrl.u32 %v234, 7
    %v236 = vsub.s32 0, %v235
    %v237 = vrot.slane %v232, %v236
    %239 = vmatprep.subr.mxu0 0.0
    %240 = vmatpush1.msra.mxu0 %v216
    %241 = vmatprep.subr.mxu0 0.0
    %242 = vmatpush1.msra.mxu0 %v217
    %243 = vmatprep.subr.mxu0 0.0
    %244 = vmatpush1.msra.mxu0 %v218
    %245 = vmatprep.subr.mxu0 0.0
    %246 = vmatpush1.msra.mxu0 %v219
    %247 = vmatprep.subr.mxu0 0.0
    %248 = vmatpush1.msra.mxu0 %v220
    %249 = vmatprep.subr.mxu0 0.0
    %250 = vmatpush1.msra.mxu0 %v221
    %251 = vmatprep.subr.mxu0 0.0
    %252 = vmatpush1.msra.mxu0 %v222
    %253 = vmatprep.subr.mxu0 0.0
    %254 = vmatpush1.msra.mxu0 %v223
    %255 = vmatprep.subr.mxu0 0.0
    %256 = vmatpush1.msra.mxu0 %v224
    %257 = vmatprep.subr.mxu0 0.0
    %258 = vmatpush1.msra.mxu0 %v225
    %259 = vmatprep.subr.mxu0 0.0
    %260 = vmatpush1.msra.mxu0 %v226
    %261 = vmatprep.subr.mxu0 0.0
    %262 = vmatpush1.msra.mxu0 %v227
    %263 = vmatprep.subr.mxu0 0.0
    %264 = vmatpush1.msra.mxu0 %v228
    %265 = vmatprep.subr.mxu0 0.0
    %266 = vmatpush1.msra.mxu0 %v229
    %267 = vmatprep.subr.mxu0 0.0
    %268 = vmatpush1.msra.mxu0 %v230
    %269 = vmatprep.subr.mxu0 0.0
    %270 = vmatpush1.msra.mxu0 %v231
    %271 = vmatprep.subr.mxu0 0.0
    %272 = vmatpush1.msra.mxu0 0.0
    %273 = vmatprep.subr.mxu0 0.0
    %274 = vmatpush1.msra.mxu0 0.0
    %275 = vmatprep.subr.mxu0 0.0
    %276 = vmatpush1.msra.mxu0 0.0
    %277 = vmatprep.subr.mxu0 0.0
    %278 = vmatpush1.msra.mxu0 0.0
    %279 = vmatprep.subr.mxu0 0.0
    %280 = vmatpush1.msra.mxu0 0.0
    %281 = vmatprep.subr.mxu0 0.0
    %282 = vmatpush1.msra.mxu0 0.0
    %283 = vmatprep.subr.mxu0 0.0
    %284 = vmatpush1.msra.mxu0 0.0
    %285 = vmatprep.subr.mxu0 0.0
    %286 = vmatpush1.msra.mxu0 0.0
    %287 = vmatprep.subr.mxu0 0.0
    %288 = vmatpush1.msra.mxu0 0.0
    %289 = vmatprep.subr.mxu0 0.0
    %290 = vmatpush1.msra.mxu0 0.0
    %291 = vmatprep.subr.mxu0 0.0
    %292 = vmatpush1.msra.mxu0 0.0
    %293 = vmatprep.subr.mxu0 0.0
    %294 = vmatpush1.msra.mxu0 0.0
    %295 = vmatprep.subr.mxu0 0.0
    %296 = vmatpush1.msra.mxu0 0.0
    %297 = vmatprep.subr.mxu0 0.0
    %298 = vmatpush1.msra.mxu0 0.0
    %299 = vmatprep.subr.mxu0 0.0
    %300 = vmatpush1.msra.mxu0 0.0
    %301 = vmatprep.subr.mxu0 0.0
    %302 = vmatpush1.msra.mxu0 0.0
    %303 = vmatprep.mubr.f32.mxu0 0.0
    %304 = vmatmul.mubr.f32.gmra.mrb[0].mxu0 %v214
    %v305 = vpop.f32.mrb[0].mxu0
    %v306 = vadd.f32 %v237, %v305
    %v307 = vpop.f32.mrb[0].mxu0
    %308 = vmatprep.mubr.f32.mxu0 0.0
    %309 = vmatmul.mubr.f32.gmra.mrb[0].mxu0 %v215
    %v310 = vpop.f32.mrb[0].mxu0
    %v311 = vadd.f32 %v237, %v310
    %v312 = vpop.f32.mrb[0].mxu0
    %313 = vdwg.mxu0
    %314 = vst [vmem:[#allocation8] sm:$0xff] %v306
    %315 = vst [vmem:[#allocation8 + $0x8] sm:$0xff] %v311
    // Predicated region
    $region34: #{tpu_custom_call.1} parent=1 // pred_check
      _
    $region35: #{tpu_custom_call.1} parent=1 // pred_check_branch
      %317 = sbr.rel (0) target = $region37
    $region36: #{tpu_custom_call.1} parent=1 // pred_region
      %s319 = ssub.s32 256, 256
      %320 = vsyncadd [#allocation4], %s319
      %s321 = sshll.u32 [#allocation8], 4
      %s322 = int_to_ptr.vmem [resolvable:$true] %s321
      %327 = dma.vmem_to_hbm [thread:$0]  %s322, 256, %s5, [#allocation4], 128, 128, 8
    $region37: #{tpu_custom_call.1} parent=1 // pred_fallthru
      _
    // Predicated region
    $region38: #{tpu_custom_call.1} parent=1 // pred_check
      _
    $region39: #{tpu_custom_call.1} parent=1 // pred_check_branch
      %329 = sbr.rel (0) target = $region41
    $region40: #{tpu_custom_call.1} parent=1 // pred_region
      %330 = dma.done [#allocation4], 256
    $region41: #{tpu_custom_call.1} parent=1 // pred_fallthru
      _
    %331 = vsyncpa [#allocation3], 1
    %332 = vsyncpa [#allocation6], 1
    %333 = vsyncpa [#allocation4], 1

</llo_original>
